<compile_context>
chip_gen: v7x
topology: tpu7x:2x2x1
jax: 0.10.0
libtpu: 0.0.40
codegen_flags: <defaults>
</compile_context>

<pallas_src>
import math
from functools import partial

import jax
import jax.numpy as jnp
import numpy as np
from jax.experimental import pallas as pl
from jax.experimental.pallas import tpu as pltpu


# ----------------------------------------------------------------------------
# Kernel: for one (token-tile, expert) grid step, accumulate the expert's
# weighted contribution into the resident output tile. At e == 0 the output
# tile is initialized with the shared expert (implicit routing weight of 1).
# ----------------------------------------------------------------------------
def _moe_kernel(active_ref,                 # SMEM [n_tiles, E] int32 (prefetch)
                x_ref,                      # (TILE_T, H)  bf16
                wg_ref, wu_ref,             # (H, D)       bf16 (routed expert e)
                wd_ref,                     # (D, H)       bf16 (routed expert e)
                sg_ref, su_ref,             # (H, Ds)      bf16 (shared expert)
                sd_ref,                     # (Ds, H)      bf16 (shared expert)
                w_ref,                      # (TILE_T, 1)  f32 routing weight
                o_ref):                     # (TILE_T, H)  f32 accumulator/output
    t = pl.program_id(0)
    e = pl.program_id(1)

    def expert_hidden(gate_w_ref, up_w_ref):
        x = x_ref[...]                                                  # bf16
        g = jnp.dot(x, gate_w_ref[...], preferred_element_type=jnp.float32)
        u = jnp.dot(x, up_w_ref[...], preferred_element_type=jnp.float32)
        return (g * jax.nn.sigmoid(g)) * u                              # SiLU, f32

    # Shared expert initializes the accumulator (runs once per token tile).
    @pl.when(e == 0)
    def _():
        h = expert_hidden(sg_ref, su_ref)
        o_ref[...] = jnp.dot(h.astype(jnp.bfloat16), sd_ref[...],
                             preferred_element_type=jnp.float32)

    # Routed expert e: skip the whole tile if no token in it selected expert e.
    @pl.when(active_ref[t, e] != 0)
    def _():
        h = expert_hidden(wg_ref, wu_ref)
        # Scale on the (TILE_T, D) hidden (cheaper than scaling (TILE_T, H)),
        # then let the MXU accumulate the weighted contribution.
        hw = (w_ref[...] * h).astype(jnp.bfloat16)
        o_ref[...] += jnp.dot(hw, wd_ref[...],
                              preferred_element_type=jnp.float32)


def _pick_vmem_limit():
    """Raise the scoped-VMEM default while leaving headroom below physical."""
    cap = 64 * 1024 * 1024
    try:
        info_cap = int(pltpu.get_tpu_info().vmem_capacity_bytes)
        if info_cap > 16 * 1024 * 1024:
            cap = info_cap                      # 128 MiB v5e/v6e, 64 MiB/TC v7x
    except Exception:
        pass
    return max(32 * 1024 * 1024, min(cap - 8 * 1024 * 1024, 110 * 1024 * 1024))


# ----------------------------------------------------------------------------
# Full MoE forward. Gating (tiny matmul + softmax + top-k) is plain JAX; the
# heavy expert compute is the Pallas kernel above.
# ----------------------------------------------------------------------------
@partial(jax.jit, static_argnames=("top_k", "tile_t"))
def moe_forward(x, params, top_k, tile_t=256):
    B, S, H = x.shape
    T = B * S
    E, _, D = params["W_gate"].shape
    Ds = params["shared_W_gate"].shape[1]

    x_flat = x.reshape(T, H).astype(jnp.float32)

    # ---- gating: softmax(x @ W_g) + top-k, dense per-expert weights --------
    scores = jax.nn.softmax(x_flat @ params["W_g"].astype(jnp.float32), axis=-1)
    topk_vals, topk_idx = jax.lax.top_k(scores, top_k)                  # [T, k]
    dense_w = jnp.sum(
        jax.nn.one_hot(topk_idx, E, dtype=jnp.float32) * topk_vals[..., None],
        axis=1)                                                         # [T, E]

    # ---- token tiling (pad T to a multiple of the tile) ---------------------
    tile_t = int(min(tile_t, max(8, T)))
    tile_t = max(8, (tile_t // 8) * 8)                 # multiple of 8 sublanes
    n_tiles = -(-T // tile_t)
    T_pad = n_tiles * tile_t
    if T_pad != T:
        x_flat = jnp.pad(x_flat, ((0, T_pad - T), (0, 0)))
        dense_w = jnp.pad(dense_w, ((0, T_pad - T), (0, 0)))

    weights_et1 = jnp.transpose(dense_w)[:, :, None]                    # [E, T_pad, 1]
    active = (dense_w.reshape(n_tiles, tile_t, E) > 0.0).any(axis=1)
    active = active.astype(jnp.int32)                                   # [n_tiles, E]

    # ---- bf16 matmul inputs (f32 accumulation inside the kernel) -----------
    xb = x_flat.astype(jnp.bfloat16)
    wg = params["W_gate"].astype(jnp.bfloat16)
    wu = params["W_up"].astype(jnp.bfloat16)
    wd = params["W_down"].astype(jnp.bfloat16)
    sg = params["shared_W_gate"].astype(jnp.bfloat16)
    su = params["shared_W_up"].astype(jnp.bfloat16)
    sd = params["shared_W_down"].astype(jnp.bfloat16)

    flops = 6 * T_pad * H * (top_k * D + Ds)
    transcendentals = T_pad * (top_k * D + Ds)
    bytes_accessed = (xb.size * 2
                      + n_tiles * 2 * (wg.size + wu.size + wd.size)
                      + 2 * (sg.size + su.size + sd.size)
                      + weights_et1.size * 4
                      + T_pad * H * 4)

    grid_spec = pltpu.PrefetchScalarGridSpec(
        num_scalar_prefetch=1,
        grid=(n_tiles, E),
        in_specs=[
            pl.BlockSpec((tile_t, H), lambda t, e, act: (t, 0)),        # x tile
            pl.BlockSpec((None, H, D), lambda t, e, act: (e, 0, 0)),    # W_gate[e]
            pl.BlockSpec((None, H, D), lambda t, e, act: (e, 0, 0)),    # W_up[e]
            pl.BlockSpec((None, D, H), lambda t, e, act: (e, 0, 0)),    # W_down[e]
            pl.BlockSpec((H, Ds), lambda t, e, act: (0, 0)),            # shared gate
            pl.BlockSpec((H, Ds), lambda t, e, act: (0, 0)),            # shared up
            pl.BlockSpec((Ds, H), lambda t, e, act: (0, 0)),            # shared down
            pl.BlockSpec((None, tile_t, 1), lambda t, e, act: (e, t, 0)),  # routing w
        ],
        out_specs=pl.BlockSpec((tile_t, H), lambda t, e, act: (t, 0)),
    )

    out = pl.pallas_call(
        _moe_kernel,
        out_shape=jax.ShapeDtypeStruct((T_pad, H), jnp.float32),
        grid_spec=grid_spec,
        compiler_params=pltpu.CompilerParams(
            dimension_semantics=("parallel", "arbitrary"),
            vmem_limit_bytes=_pick_vmem_limit(),
        ),
        cost_estimate=pl.CostEstimate(
            flops=int(flops),
            transcendentals=int(transcendentals),
            bytes_accessed=int(bytes_accessed),
        ),
    )(active, xb, wg, wu, wd, sg, su, sd, weights_et1)

    return out[:T].reshape(B, S, H)


# ----------------------------------------------------------------------------
# Pure-JAX reference mirroring the PyTorch semantics with the same numerics
# (bf16 matmul inputs, f32 accumulation, weight applied before down-proj).
# ----------------------------------------------------------------------------
@partial(jax.jit, static_argnames=("top_k",))
def moe_reference(x, params, top_k):
    B, S, H = x.shape
    xf = x.reshape(-1, H).astype(jnp.float32)
    xb = xf.astype(jnp.bfloat16)

    def expert_hidden(wg, wu):
        g = jnp.dot(xb, wg.astype(jnp.bfloat16), preferred_element_type=jnp.float32)
        u = jnp.dot(xb, wu.astype(jnp.bfloat16), preferred_element_type=jnp.float32)
        return (g * jax.nn.sigmoid(g)) * u

    hs = expert_hidden(params["shared_W_gate"], params["shared_W_up"])
    out = jnp.dot(hs.astype(jnp.bfloat16),
                  params["shared_W_down"].astype(jnp.bfloat16),
                  preferred_element_type=jnp.float32)

    scores = jax.nn.softmax(xf @ params["W_g"].astype(jnp.float32), axis=-1)
    vals, idx = jax.lax.top_k(scores, top_k)
    E = params["W_g"].shape[1]
    for e in range(E):
        h = expert_hidden(params["W_gate"][e], params["W_up"][e])
        w = jnp.sum(jnp.where(idx == e, vals, 0.0), axis=-1, keepdims=True)
        hw = (w * h).astype(jnp.bfloat16)
        out = out + jnp.dot(hw, params["W_down"][e].astype(jnp.bfloat16),
                            preferred_element_type=jnp.float32)
    return out.reshape(B, S, H)


if __name__ == "__main__":
    # Small config consistent with the module.
    B, S = 2, 8
    d_hidden = 32
    d_expert = 32
    n_routed_experts = 4
    n_experts_per_token = 2
    n_shared_experts = 2
    d_shared = d_expert * n_shared_experts

    key = jax.random.PRNGKey(0)
    ks = jax.random.split(key, 8)
    sh = 1.0 / math.sqrt(d_hidden)
    se = 1.0 / math.sqrt(d_expert)
    ss = 1.0 / math.sqrt(d_shared)

    params = {
        "W_gate": jax.random.normal(ks[0], (n_routed_experts, d_hidden, d_expert), jnp.float32) * sh,
        "W_up":   jax.random.normal(ks[1], (n_routed_experts, d_hidden, d_expert), jnp.float32) * sh,
        "W_down": jax.random.normal(ks[2], (n_routed_experts, d_expert, d_hidden), jnp.float32) * se,
        "shared_W_gate": jax.random.normal(ks[3], (d_hidden, d_shared), jnp.float32) * sh,
        "shared_W_up":   jax.random.normal(ks[4], (d_hidden, d_shared), jnp.float32) * sh,
        "shared_W_down": jax.random.normal(ks[5], (d_shared, d_hidden), jnp.float32) * ss,
        "W_g": jax.random.normal(ks[6], (d_hidden, n_routed_experts), jnp.float32) * sh,
    }

    x = jax.random.normal(ks[7], (B, S, d_hidden), jnp.float32)

    # tile_t=8 exercises multiple token tiles (T = 16 -> 2 tiles) at toy size;
    # at production shapes the default of 256 rows/tile is used.
    out = moe_forward(x, params, top_k=n_experts_per_token, tile_t=8)
    out = jax.block_until_ready(out)

    ref = moe_reference(x, params, top_k=n_experts_per_token)
    assert out.shape == (B, S, d_hidden)
    np.testing.assert_allclose(np.asarray(out), np.asarray(ref),
                               atol=1e-4, rtol=1e-4)

    print("KERNEL_OK")
</pallas_src>

<mosaic_0001>
module attributes {stable_mosaic.version = 11 : i64} {
  func.func @_moe_kernel(%arg0: i32, %arg1: i32, %arg2: memref<2x4xi32, #tpu.memory_space<smem>>, %arg3: memref<8x32xbf16, #tpu.memory_space<vmem>>, %arg4: memref<1x32x32xbf16, #tpu.memory_space<vmem>>, %arg5: memref<1x32x32xbf16, #tpu.memory_space<vmem>>, %arg6: memref<1x32x32xbf16, #tpu.memory_space<vmem>>, %arg7: memref<32x64xbf16, #tpu.memory_space<vmem>>, %arg8: memref<32x64xbf16, #tpu.memory_space<vmem>>, %arg9: memref<64x32xbf16, #tpu.memory_space<vmem>>, %arg10: memref<1x8x1xf32, #tpu.memory_space<vmem>>, %arg11: memref<8x32xf32, #tpu.memory_space<vmem>>) attributes {dimension_semantics = [#tpu.dimension_semantics<parallel>, #tpu.dimension_semantics<arbitrary>], iteration_bounds = array<i64: 2, 4>, scalar_prefetch = 1 : i64, scratch_operands = 0 : i64, tpu.core_type = #tpu.core_type<tc>, window_params = [{transform_indices = @transform_0, window_bounds = array<i64: 8, 32>}, {transform_indices = @transform_1, window_bounds = array<i64: 1, 32, 32>}, {transform_indices = @transform_2, window_bounds = array<i64: 1, 32, 32>}, {transform_indices = @transform_3, window_bounds = array<i64: 1, 32, 32>}, {pipeline_mode = #tpu.pipeline_mode<synchronous>, transform_indices = @transform_4, window_bounds = array<i64: 32, 64>}, {pipeline_mode = #tpu.pipeline_mode<synchronous>, transform_indices = @transform_5, window_bounds = array<i64: 32, 64>}, {pipeline_mode = #tpu.pipeline_mode<synchronous>, transform_indices = @transform_6, window_bounds = array<i64: 64, 32>}, {transform_indices = @transform_7, window_bounds = array<i64: 1, 8, 1>}, {transform_indices = @transform_8, window_bounds = array<i64: 8, 32>}]} {
    %c0_i32 = arith.constant 0 : i32
    %0 = arith.cmpi eq, %arg1, %c0_i32 : i32
    %1 = arith.extui %0 : i1 to i32
    %c0_i32_0 = arith.constant 0 : i32
    %2 = arith.cmpi ne, %1, %c0_i32_0 : i32
    scf.if %2 {
      %c0 = arith.constant 0 : index
      %c0_3 = arith.constant 0 : index
      %9 = vector.load %arg3[%c0, %c0_3] : memref<8x32xbf16, #tpu.memory_space<vmem>>, vector<8x32xbf16>
      %c0_4 = arith.constant 0 : index
      %c0_5 = arith.constant 0 : index
      %10 = vector.load %arg7[%c0_4, %c0_5] : memref<32x64xbf16, #tpu.memory_space<vmem>>, vector<32x64xbf16>
      %cst = arith.constant dense<0.000000e+00> : vector<8x64xf32>
      %11 = tpu.matmul %9, %10, %cst {dimension_numbers = #tpu.dot_dimension_numbers<[1], [0], [0], [1], [0, 0, 1, 1], [], []>} : vector<8x32xbf16>, vector<32x64xbf16>, vector<8x64xf32> -> vector<8x64xf32>
      %c0_6 = arith.constant 0 : index
      %c0_7 = arith.constant 0 : index
      %12 = vector.load %arg8[%c0_6, %c0_7] : memref<32x64xbf16, #tpu.memory_space<vmem>>, vector<32x64xbf16>
      %cst_8 = arith.constant dense<0.000000e+00> : vector<8x64xf32>
      %13 = tpu.matmul %9, %12, %cst_8 {dimension_numbers = #tpu.dot_dimension_numbers<[1], [0], [0], [1], [0, 0, 1, 1], [], []>} : vector<8x32xbf16>, vector<32x64xbf16>, vector<8x64xf32> -> vector<8x64xf32>
      %14 = arith.negf %11 : vector<8x64xf32>
      %15 = math.exp %14 : vector<8x64xf32>
      %cst_9 = arith.constant 1.000000e+00 : f32
      %16 = vector.broadcast %cst_9 : f32 to vector<8x64xf32>
      %17 = arith.addf %16, %15 : vector<8x64xf32>
      %18 = arith.divf %16, %17 : vector<8x64xf32>
      %19 = arith.mulf %11, %18 : vector<8x64xf32>
      %20 = arith.mulf %19, %13 : vector<8x64xf32>
      %21 = arith.truncf %20 : vector<8x64xf32> to vector<8x64xbf16>
      %c0_10 = arith.constant 0 : index
      %c0_11 = arith.constant 0 : index
      %22 = vector.load %arg9[%c0_10, %c0_11] : memref<64x32xbf16, #tpu.memory_space<vmem>>, vector<64x32xbf16>
      %cst_12 = arith.constant dense<0.000000e+00> : vector<8x32xf32>
      %23 = tpu.matmul %21, %22, %cst_12 {dimension_numbers = #tpu.dot_dimension_numbers<[1], [0], [0], [1], [0, 0, 1, 1], [], []>} : vector<8x64xbf16>, vector<64x32xbf16>, vector<8x32xf32> -> vector<8x32xf32>
      %c0_13 = arith.constant 0 : index
      %c0_14 = arith.constant 0 : index
      %24 = vector.load %arg11[%c0_13, %c0_14] : memref<8x32xf32, #tpu.memory_space<vmem>>, vector<8x32xf32>
      tpu.vector_store %arg11[%c0_13, %c0_14], %23 {strides = array<i32>} : memref<8x32xf32, #tpu.memory_space<vmem>>, vector<8x32xf32>,
    } else {
    }
    %3 = arith.index_cast %arg0 : i32 to index
    %4 = arith.index_cast %arg1 : i32 to index
    %5 = memref.load %arg2[%3, %4] : memref<2x4xi32, #tpu.memory_space<smem>>
    %c0_i32_1 = arith.constant 0 : i32
    %6 = arith.cmpi ne, %5, %c0_i32_1 : i32
    %7 = arith.extui %6 : i1 to i32
    %c0_i32_2 = arith.constant 0 : i32
    %8 = arith.cmpi ne, %7, %c0_i32_2 : i32
    scf.if %8 {
      %c0 = arith.constant 0 : index
      %c0_3 = arith.constant 0 : index
      %9 = vector.load %arg3[%c0, %c0_3] : memref<8x32xbf16, #tpu.memory_space<vmem>>, vector<8x32xbf16>
      %c0_4 = arith.constant 0 : index
      %c0_5 = arith.constant 0 : index
      %c0_6 = arith.constant 0 : index
      %10 = vector.load %arg4[%c0_4, %c0_5, %c0_6] : memref<1x32x32xbf16, #tpu.memory_space<vmem>>, vector<1x32x32xbf16>
      %11 = vector.shape_cast %10 : vector<1x32x32xbf16> to vector<32x32xbf16>
      %cst = arith.constant dense<0.000000e+00> : vector<8x32xf32>
      %12 = tpu.matmul %9, %11, %cst {dimension_numbers = #tpu.dot_dimension_numbers<[1], [0], [0], [1], [0, 0, 1, 1], [], []>} : vector<8x32xbf16>, vector<32x32xbf16>, vector<8x32xf32> -> vector<8x32xf32>
      %c0_7 = arith.constant 0 : index
      %c0_8 = arith.constant 0 : index
      %c0_9 = arith.constant 0 : index
      %13 = vector.load %arg5[%c0_7, %c0_8, %c0_9] : memref<1x32x32xbf16, #tpu.memory_space<vmem>>, vector<1x32x32xbf16>
      %14 = vector.shape_cast %13 : vector<1x32x32xbf16> to vector<32x32xbf16>
      %cst_10 = arith.constant dense<0.000000e+00> : vector<8x32xf32>
      %15 = tpu.matmul %9, %14, %cst_10 {dimension_numbers = #tpu.dot_dimension_numbers<[1], [0], [0], [1], [0, 0, 1, 1], [], []>} : vector<8x32xbf16>, vector<32x32xbf16>, vector<8x32xf32> -> vector<8x32xf32>
      %16 = arith.negf %12 : vector<8x32xf32>
      %17 = math.exp %16 : vector<8x32xf32>
      %cst_11 = arith.constant 1.000000e+00 : f32
      %18 = vector.broadcast %cst_11 : f32 to vector<8x32xf32>
      %19 = arith.addf %18, %17 : vector<8x32xf32>
      %20 = arith.divf %18, %19 : vector<8x32xf32>
      %21 = arith.mulf %12, %20 : vector<8x32xf32>
      %22 = arith.mulf %21, %15 : vector<8x32xf32>
      %c0_12 = arith.constant 0 : index
      %c0_13 = arith.constant 0 : index
      %c0_14 = arith.constant 0 : index
      %23 = vector.load %arg10[%c0_12, %c0_13, %c0_14] : memref<1x8x1xf32, #tpu.memory_space<vmem>>, vector<1x8x1xf32>
      %24 = vector.shape_cast %23 : vector<1x8x1xf32> to vector<8x1xf32>
      %25 = vector.broadcast %24 : vector<8x1xf32> to vector<8x32xf32>
      %26 = arith.mulf %25, %22 : vector<8x32xf32>
      %27 = arith.truncf %26 : vector<8x32xf32> to vector<8x32xbf16>
      %c0_15 = arith.constant 0 : index
      %c0_16 = arith.constant 0 : index
      %28 = vector.load %arg11[%c0_15, %c0_16] : memref<8x32xf32, #tpu.memory_space<vmem>>, vector<8x32xf32>
      %c0_17 = arith.constant 0 : index
      %c0_18 = arith.constant 0 : index
      %c0_19 = arith.constant 0 : index
      %29 = vector.load %arg6[%c0_17, %c0_18, %c0_19] : memref<1x32x32xbf16, #tpu.memory_space<vmem>>, vector<1x32x32xbf16>
      %30 = vector.shape_cast %29 : vector<1x32x32xbf16> to vector<32x32xbf16>
      %cst_20 = arith.constant dense<0.000000e+00> : vector<8x32xf32>
      %31 = tpu.matmul %27, %30, %cst_20 {dimension_numbers = #tpu.dot_dimension_numbers<[1], [0], [0], [1], [0, 0, 1, 1], [], []>} : vector<8x32xbf16>, vector<32x32xbf16>, vector<8x32xf32> -> vector<8x32xf32>
      %32 = arith.addf %28, %31 : vector<8x32xf32>
      %c0_21 = arith.constant 0 : index
      %c0_22 = arith.constant 0 : index
      %33 = vector.load %arg11[%c0_21, %c0_22] : memref<8x32xf32, #tpu.memory_space<vmem>>, vector<8x32xf32>
      tpu.vector_store %arg11[%c0_21, %c0_22], %32 {strides = array<i32>} : memref<8x32xf32, #tpu.memory_space<vmem>>, vector<8x32xf32>,
    } else {
    }
    return
  }
  func.func @transform_0(%arg0: i32, %arg1: i32, %arg2: memref<2x4xi32, #tpu.memory_space<smem>>) -> (i32, i32) {
    %c0_i32 = arith.constant 0 : i32
    %c0_i32_0 = arith.constant 0 : i32
    return %arg0, %c0_i32 : i32, i32
  }
  func.func @transform_1(%arg0: i32, %arg1: i32, %arg2: memref<2x4xi32, #tpu.memory_space<smem>>) -> (i32, i32, i32) {
    %c0_i32 = arith.constant 0 : i32
    %c0_i32_0 = arith.constant 0 : i32
    %c0_i32_1 = arith.constant 0 : i32
    return %arg1, %c0_i32, %c0_i32_0 : i32, i32, i32
  }
  func.func @transform_2(%arg0: i32, %arg1: i32, %arg2: memref<2x4xi32, #tpu.memory_space<smem>>) -> (i32, i32, i32) {
    %c0_i32 = arith.constant 0 : i32
    %c0_i32_0 = arith.constant 0 : i32
    %c0_i32_1 = arith.constant 0 : i32
    return %arg1, %c0_i32, %c0_i32_0 : i32, i32, i32
  }
  func.func @transform_3(%arg0: i32, %arg1: i32, %arg2: memref<2x4xi32, #tpu.memory_space<smem>>) -> (i32, i32, i32) {
    %c0_i32 = arith.constant 0 : i32
    %c0_i32_0 = arith.constant 0 : i32
    %c0_i32_1 = arith.constant 0 : i32
    return %arg1, %c0_i32, %c0_i32_0 : i32, i32, i32
  }
  func.func @transform_4(%arg0: i32, %arg1: i32, %arg2: memref<2x4xi32, #tpu.memory_space<smem>>) -> (i32, i32) {
    %c0_i32 = arith.constant 0 : i32
    %c0_i32_0 = arith.constant 0 : i32
    %c0_i32_1 = arith.constant 0 : i32
    return %c0_i32, %c0_i32_0 : i32, i32
  }
  func.func @transform_5(%arg0: i32, %arg1: i32, %arg2: memref<2x4xi32, #tpu.memory_space<smem>>) -> (i32, i32) {
    %c0_i32 = arith.constant 0 : i32
    %c0_i32_0 = arith.constant 0 : i32
    %c0_i32_1 = arith.constant 0 : i32
    return %c0_i32, %c0_i32_0 : i32, i32
  }
  func.func @transform_6(%arg0: i32, %arg1: i32, %arg2: memref<2x4xi32, #tpu.memory_space<smem>>) -> (i32, i32) {
    %c0_i32 = arith.constant 0 : i32
    %c0_i32_0 = arith.constant 0 : i32
    %c0_i32_1 = arith.constant 0 : i32
    return %c0_i32, %c0_i32_0 : i32, i32
  }
  func.func @transform_7(%arg0: i32, %arg1: i32, %arg2: memref<2x4xi32, #tpu.memory_space<smem>>) -> (i32, i32, i32) {
    %c0_i32 = arith.constant 0 : i32
    %c0_i32_0 = arith.constant 0 : i32
    return %arg1, %arg0, %c0_i32 : i32, i32, i32
  }
  func.func @transform_8(%arg0: i32, %arg1: i32, %arg2: memref<2x4xi32, #tpu.memory_space<smem>>) -> (i32, i32) {
    %c0_i32 = arith.constant 0 : i32
    %c0_i32_0 = arith.constant 0 : i32
    return %arg0, %c0_i32 : i32, i32
  }
}

</mosaic_0001>

<llo_original>
// kernel: moe_forward.1
$region0: #{moe_forward.1}
  #allocation0 [shape = 'u32[]', space=smem, size = 0x4, offset = 0x4, fixed_abs, tag = 'smem constant byte address 0x4 - core index']
  #allocation1 [shape = 'u32[144,128]{1,0:T(1,128)}', space=vmem, size = 0x12000, scoped, tag = 'internal scratch']
  #allocation2 [shape = 's32[1]{0}', space=sflag, size = 0x4, scoped, tag = 'scoped memory for moe_forward.1']
  #allocation3 [shape = 'u8[1024]{0}', space=smem, size = 0x400, scoped, tag = 'prefetched SMEM operand 0']
  %s0 = inlined_call_operand.vmem [shape: s32[2,4], index: 0, kind: input, shape index: {}]
  %s1 = inlined_call_operand.vmem [shape: bf16[16,32], index: 1, kind: input, shape index: {}]
  %s2 = inlined_call_operand.vmem [shape: bf16[4,32,32], index: 2, kind: input, shape index: {}]
  %s3 = inlined_call_operand.vmem [shape: bf16[4,32,32], index: 3, kind: input, shape index: {}]
  %s4 = inlined_call_operand.vmem [shape: bf16[4,32,32], index: 4, kind: input, shape index: {}]
  %s5 = inlined_call_operand.vmem [shape: bf16[32,64], index: 5, kind: input, shape index: {}]
  %s6 = inlined_call_operand.vmem [shape: bf16[32,64], index: 6, kind: input, shape index: {}]
  %s7 = inlined_call_operand.vmem [shape: bf16[64,32], index: 7, kind: input, shape index: {}]
  %s8 = inlined_call_operand.vmem [shape: f32[4,16,1], index: 8, kind: input, shape index: {}]
  %s9 = inlined_call_operand.hbm [shape: f32[16,32], index: 9, kind: output, shape index: {}]
  %s10 = sld [smem:[#allocation0]]
  $region73: #{moe_forward.1} parent=0
    _
  %s12 = ssub.s32 1, %s10
  %s13 = scalar_select 0, %s12, %s10
  %s14 = sshll.u32 %s0, 4
  %s15 = int_to_ptr.vmem [resolvable:$true] %s14
  %17 = dma.vmem_to_smem %s15, 32, [#allocation3], [#allocation2]
  %18 = dma.done [#allocation2], 32
  %19 = sfence
  $region1: #{moe_forward.1} parent=0
    #allocation4 [shape = 'u8[8192]{0}', space=vmem, size = 0x2000, scoped, tag = 'output window, operand 0']
    #allocation5 [shape = 's32[2]{0}', space=sflag, size = 0x8, scoped, tag = 'scoped memory for moe_forward.1']
    %20 = vsyncpa [#allocation5], 0
    %s21 = scalar_lea.sflag [#allocation5], 1
    %22 = vsyncpa %s21, 0
    loop: start=0, step=1, limit=10
    $region2: #{moe_forward.1} parent=1 // loop_pre_header
      _
    $region3: #{moe_forward.1} parent=1 // loop_header
      %s24 = sphi 0, %s28
      %p25 = scmp.ge.s32.totalorder %s24, 10
      %s31 = sphi 0, %s43
      %s32 = sphi 0, %s39
      %s33 = sphi 0, %s31
      %s34 = sphi 0, %s32
      %s35 = sphi 0, %s33
      %s36 = sphi 0, %s34
      %s46 = sphi 0, %s48
      %s49 = sphi 0, %s46
      %s50 = sphi 0, %s49
      %s66 = sphi 0, %s50
      %s72 = sphi 0, %s74
      %s75 = sphi 0, %s72
      %s76 = sphi 0, %s75
      %s92 = sphi 0, %s76
      %s98 = sphi 0, %s100
      %s101 = sphi 0, %s98
      %s102 = sphi 0, %s101
      %s118 = sphi 0, %s102
      %s124 = sphi 0, %s126
      %s127 = sphi 0, %s124
      %s128 = sphi 0, %s127
      %s144 = sphi 0, %s128
      %s148 = sphi 0, %s148
      %s150 = sphi 0, %s148
      %s151 = sphi 0, %s150
      %s165 = sphi 0, %s151
      %s169 = sphi 0, %s169
      %s171 = sphi 0, %s169
      %s172 = sphi 0, %s171
      %s186 = sphi 0, %s172
      %s190 = sphi 0, %s190
      %s192 = sphi 0, %s190
      %s193 = sphi 0, %s192
      %s207 = sphi 0, %s193
      %s215 = sphi 0, %s217
      %s218 = sphi 0, %s215
      %s219 = sphi 0, %s218
      %s235 = sphi 0, %s219
      %s241 = sphi 0, %s243
      %s244 = sphi 0, %s241
      %s245 = sphi 0, %s244
      %s261 = sphi 0, %s245
    $region4: #{moe_forward.1} parent=1 // loop_header_branch
      %27 = sbr.rel (%p25) target = $region8
    $region5: #{moe_forward.1} parent=1 // loop_body
      %s29 = ssub.s32 %s24, 1
      %s30 = ssub.s32 %s24, 2
      %s37 = sadd.s32 1, %s32
      %p38 = scmp.ge.s32.totalorder %s37, 4
      %s39 = scalar_select %p38, 0, %s37
      %s40 = sadd.s32 1, %s31
      %s41 = scalar_select %p38, %s40, %s31
      %p42 = scmp.ge.s32.totalorder %s41, 2
      %s43 = scalar_select %p42, 0, %s41
      %s44 = ssub.s32 %s31, %s43
      %p45 = scmp.eq.s32.totalorder %s44, 0
      %s47 = sadd.s32 %s46, 1
      %s48 = scalar_select %p45, %s46, %s47
      %p51 = pneg %p45
      %p52 = scmp.eq.s32.totalorder %s24, 7
      %p53 = por %p51, %p52
      %p54 = scmp.ne.s32.totalorder %s46, %s49
      %p55 = scmp.eq.s32.totalorder %s24, 0
      %p56 = por %p54, %p55
      %p57 = scmp.ne.s32.totalorder %s46, %s49
      %p58 = scmp.eq.s32.totalorder %s29, 7
      %p59 = por %p57, %p58
      %p60 = scmp.ne.s32.totalorder %s49, %s50
      %p61 = scmp.eq.s32.totalorder %s29, 0
      %p62 = por %p60, %p61
      %p63 = scmp.ne.s32.totalorder %s49, %s50
      %p64 = scmp.eq.s32.totalorder %s30, 7
      %p65 = por %p63, %p64
      %p67 = scmp.ne.s32.totalorder %s50, %s66
      %p68 = scmp.eq.s32.totalorder %s30, 0
      %p69 = por %p67, %p68
      %s70 = ssub.s32 %s32, %s39
      %p71 = scmp.eq.s32.totalorder %s70, 0
      %s73 = sadd.s32 %s72, 1
      %s74 = scalar_select %p71, %s72, %s73
      %p77 = pneg %p71
      %p78 = scmp.eq.s32.totalorder %s24, 7
      %p79 = por %p77, %p78
      %p80 = scmp.ne.s32.totalorder %s72, %s75
      %p81 = scmp.eq.s32.totalorder %s24, 0
      %p82 = por %p80, %p81
      %p83 = scmp.ne.s32.totalorder %s72, %s75
      %p84 = scmp.eq.s32.totalorder %s29, 7
      %p85 = por %p83, %p84
      %p86 = scmp.ne.s32.totalorder %s75, %s76
      %p87 = scmp.eq.s32.totalorder %s29, 0
      %p88 = por %p86, %p87
      %p89 = scmp.ne.s32.totalorder %s75, %s76
      %p90 = scmp.eq.s32.totalorder %s30, 7
      %p91 = por %p89, %p90
      %p93 = scmp.ne.s32.totalorder %s76, %s92
      %p94 = scmp.eq.s32.totalorder %s30, 0
      %p95 = por %p93, %p94
      %s96 = ssub.s32 %s32, %s39
      %p97 = scmp.eq.s32.totalorder %s96, 0
      %s99 = sadd.s32 %s98, 1
      %s100 = scalar_select %p97, %s98, %s99
      %p103 = pneg %p97
      %p104 = scmp.eq.s32.totalorder %s24, 7
      %p105 = por %p103, %p104
      %p106 = scmp.ne.s32.totalorder %s98, %s101
      %p107 = scmp.eq.s32.totalorder %s24, 0
      %p108 = por %p106, %p107
      %p109 = scmp.ne.s32.totalorder %s98, %s101
      %p110 = scmp.eq.s32.totalorder %s29, 7
      %p111 = por %p109, %p110
      %p112 = scmp.ne.s32.totalorder %s101, %s102
      %p113 = scmp.eq.s32.totalorder %s29, 0
      %p114 = por %p112, %p113
      %p115 = scmp.ne.s32.totalorder %s101, %s102
      %p116 = scmp.eq.s32.totalorder %s30, 7
      %p117 = por %p115, %p116
      %p119 = scmp.ne.s32.totalorder %s102, %s118
      %p120 = scmp.eq.s32.totalorder %s30, 0
      %p121 = por %p119, %p120
      %s122 = ssub.s32 %s32, %s39
      %p123 = scmp.eq.s32.totalorder %s122, 0
      %s125 = sadd.s32 %s124, 1
      %s126 = scalar_select %p123, %s124, %s125
      %p129 = pneg %p123
      %p130 = scmp.eq.s32.totalorder %s24, 7
      %p131 = por %p129, %p130
      %p132 = scmp.ne.s32.totalorder %s124, %s127
      %p133 = scmp.eq.s32.totalorder %s24, 0
      %p134 = por %p132, %p133
      %p135 = scmp.ne.s32.totalorder %s124, %s127
      %p136 = scmp.eq.s32.totalorder %s29, 7
      %p137 = por %p135, %p136
      %p138 = scmp.ne.s32.totalorder %s127, %s128
      %p139 = scmp.eq.s32.totalorder %s29, 0
      %p140 = por %p138, %p139
      %p141 = scmp.ne.s32.totalorder %s127, %s128
      %p142 = scmp.eq.s32.totalorder %s30, 7
      %p143 = por %p141, %p142
      %p145 = scmp.ne.s32.totalorder %s128, %s144
      %p146 = scmp.eq.s32.totalorder %s30, 0
      %p147 = por %p145, %p146
      %s149 = sadd.s32 %s148, 1
      %p152 = scmp.eq.s32.totalorder %s24, 7
      %p153 = scmp.ne.s32.totalorder %s148, %s150
      %p154 = scmp.eq.s32.totalorder %s24, 0
      %p155 = por %p153, %p154
      %p156 = scmp.ne.s32.totalorder %s148, %s150
      %p157 = scmp.eq.s32.totalorder %s29, 7
      %p158 = por %p156, %p157
      %p159 = scmp.ne.s32.totalorder %s150, %s151
      %p160 = scmp.eq.s32.totalorder %s29, 0
      %p161 = por %p159, %p160
      %p162 = scmp.ne.s32.totalorder %s150, %s151
      %p163 = scmp.eq.s32.totalorder %s30, 7
      %p164 = por %p162, %p163
      %p166 = scmp.ne.s32.totalorder %s151, %s165
      %p167 = scmp.eq.s32.totalorder %s30, 0
      %p168 = por %p166, %p167
      %s170 = sadd.s32 %s169, 1
      %p173 = scmp.eq.s32.totalorder %s24, 7
      %p174 = scmp.ne.s32.totalorder %s169, %s171
      %p175 = scmp.eq.s32.totalorder %s24, 0
      %p176 = por %p174, %p175
      %p177 = scmp.ne.s32.totalorder %s169, %s171
      %p178 = scmp.eq.s32.totalorder %s29, 7
      %p179 = por %p177, %p178
      %p180 = scmp.ne.s32.totalorder %s171, %s172
      %p181 = scmp.eq.s32.totalorder %s29, 0
      %p182 = por %p180, %p181
      %p183 = scmp.ne.s32.totalorder %s171, %s172
      %p184 = scmp.eq.s32.totalorder %s30, 7
      %p185 = por %p183, %p184
      %p187 = scmp.ne.s32.totalorder %s172, %s186
      %p188 = scmp.eq.s32.totalorder %s30, 0
      %p189 = por %p187, %p188
      %s191 = sadd.s32 %s190, 1
      %p194 = scmp.eq.s32.totalorder %s24, 7
      %p195 = scmp.ne.s32.totalorder %s190, %s192
      %p196 = scmp.eq.s32.totalorder %s24, 0
      %p197 = por %p195, %p196
      %p198 = scmp.ne.s32.totalorder %s190, %s192
      %p199 = scmp.eq.s32.totalorder %s29, 7
      %p200 = por %p198, %p199
      %p201 = scmp.ne.s32.totalorder %s192, %s193
      %p202 = scmp.eq.s32.totalorder %s29, 0
      %p203 = por %p201, %p202
      %p204 = scmp.ne.s32.totalorder %s192, %s193
      %p205 = scmp.eq.s32.totalorder %s30, 7
      %p206 = por %p204, %p205
      %p208 = scmp.ne.s32.totalorder %s193, %s207
      %p209 = scmp.eq.s32.totalorder %s30, 0
      %p210 = por %p208, %p209
      %s211 = ssub.s32 %s32, %s39
      %s212 = ssub.s32 %s31, %s43
      %s213 = sor.u32 %s211, %s212
      %p214 = scmp.eq.s32.totalorder %s213, 0
      %s216 = sadd.s32 %s215, 1
      %s217 = scalar_select %p214, %s215, %s216
      %p220 = pneg %p214
      %p221 = scmp.eq.s32.totalorder %s24, 7
      %p222 = por %p220, %p221
      %p223 = scmp.ne.s32.totalorder %s215, %s218
      %p224 = scmp.eq.s32.totalorder %s24, 0
      %p225 = por %p223, %p224
      %p226 = scmp.ne.s32.totalorder %s215, %s218
      %p227 = scmp.eq.s32.totalorder %s29, 7
      %p228 = por %p226, %p227
      %p229 = scmp.ne.s32.totalorder %s218, %s219
      %p230 = scmp.eq.s32.totalorder %s29, 0
      %p231 = por %p229, %p230
      %p232 = scmp.ne.s32.totalorder %s218, %s219
      %p233 = scmp.eq.s32.totalorder %s30, 7
      %p234 = por %p232, %p233
      %p236 = scmp.ne.s32.totalorder %s219, %s235
      %p237 = scmp.eq.s32.totalorder %s30, 0
      %p238 = por %p236, %p237
      %s239 = ssub.s32 %s31, %s43
      %p240 = scmp.eq.s32.totalorder %s239, 0
      %s242 = sadd.s32 %s241, 1
      %s243 = scalar_select %p240, %s241, %s242
      %p246 = pneg %p240
      %p247 = scmp.eq.s32.totalorder %s24, 7
      %p248 = por %p246, %p247
      %p249 = scmp.ne.s32.totalorder %s241, %s244
      %p250 = scmp.eq.s32.totalorder %s24, 0
      %p251 = por %p249, %p250
      %p252 = scmp.ne.s32.totalorder %s241, %s244
      %p253 = scmp.eq.s32.totalorder %s29, 7
      %p254 = por %p252, %p253
      %p255 = scmp.ne.s32.totalorder %s244, %s245
      %p256 = scmp.eq.s32.totalorder %s29, 0
      %p257 = por %p255, %p256
      %p258 = scmp.ne.s32.totalorder %s244, %s245
      %p259 = scmp.eq.s32.totalorder %s30, 7
      %p260 = por %p258, %p259
      %p262 = scmp.ne.s32.totalorder %s245, %s261
      %p263 = scmp.eq.s32.totalorder %s30, 0
      %p264 = por %p262, %p263
      %p265 = scmp.le.s32.totalorder 1, %s24
      %p266 = scmp.lt.s32.totalorder %s24, 9
      %p267 = pnand %p265, %p266
      %p268 = pneg %p267
      // Predicated region
      $region9: #{moe_forward.1} parent=5 // pred_check
        _
      $region10: #{moe_forward.1} parent=5 // pred_check_branch
        %270 = sbr.rel (%p267) target = $region12
      $region11: #{moe_forward.1} parent=5 // pred_region
        %s271 = ssub.s32 %s24, 1
        // Predicated region
        $region13: #{moe_forward.1} parent=11 // pred_check
          %p272 = pneg %p161
        $region14: #{moe_forward.1} parent=11 // pred_check_branch
          %274 = sbr.rel (%p272) target = $region16
        $region15: #{moe_forward.1} parent=11 // pred_region
          _
        $region16: #{moe_forward.1} parent=11 // pred_fallthru
          _
        // Predicated region
        $region17: #{moe_forward.1} parent=11 // pred_check
          %p275 = pneg %p182
        $region18: #{moe_forward.1} parent=11 // pred_check_branch
          %277 = sbr.rel (%p275) target = $region20
        $region19: #{moe_forward.1} parent=11 // pred_region
          _
        $region20: #{moe_forward.1} parent=11 // pred_fallthru
          _
        // Predicated region
        $region21: #{moe_forward.1} parent=11 // pred_check
          %p278 = pneg %p203
        $region22: #{moe_forward.1} parent=11 // pred_check_branch
          %280 = sbr.rel (%p278) target = $region24
        $region23: #{moe_forward.1} parent=11 // pred_region
          _
        $region24: #{moe_forward.1} parent=11 // pred_fallthru
          _
      $region12: #{moe_forward.1} parent=5 // pred_fallthru
        _
      %p281 = scmp.lt.s32.totalorder %s24, 8
      // Predicated region
      $region25: #{moe_forward.1} parent=5 // pred_check
        %p282 = pneg %p281
      $region26: #{moe_forward.1} parent=5 // pred_check_branch
        %284 = sbr.rel (%p282) target = $region28
      $region27: #{moe_forward.1} parent=5 // pred_region
        // Predicated region
        $region29: #{moe_forward.1} parent=27 // pred_check
          %p285 = pneg %p56
        $region30: #{moe_forward.1} parent=27 // pred_check_branch
          %287 = sbr.rel (%p285) target = $region32
        $region31: #{moe_forward.1} parent=27 // pred_region
          %p288 = scmp.lt.s32.totalorder %s31, 1
          %s289 = scalar_select %p288, %s31, 1
          %s290 = smul.addr %s289, 4
          %s291 = scalar_lea.vmem %s1, %s290
        $region32: #{moe_forward.1} parent=27 // pred_fallthru
          _
        // Predicated region
        $region33: #{moe_forward.1} parent=27 // pred_check
          %p292 = pneg %p82
        $region34: #{moe_forward.1} parent=27 // pred_check_branch
          %294 = sbr.rel (%p292) target = $region36
        $region35: #{moe_forward.1} parent=27 // pred_region
          %p295 = scmp.lt.s32.totalorder %s32, 3
          %s296 = scalar_select %p295, %s32, 3
          %s297 = smul.addr %s296, 4
          %s298 = smul.addr %s297, 4
          %s299 = scalar_lea.vmem %s2, %s298
        $region36: #{moe_forward.1} parent=27 // pred_fallthru
          _
        // Predicated region
        $region37: #{moe_forward.1} parent=27 // pred_check
          %p300 = pneg %p108
        $region38: #{moe_forward.1} parent=27 // pred_check_branch
          %302 = sbr.rel (%p300) target = $region40
        $region39: #{moe_forward.1} parent=27 // pred_region
          %p303 = scmp.lt.s32.totalorder %s32, 3
          %s304 = scalar_select %p303, %s32, 3
          %s305 = smul.addr %s304, 4
          %s306 = smul.addr %s305, 4
          %s307 = scalar_lea.vmem %s3, %s306
        $region40: #{moe_forward.1} parent=27 // pred_fallthru
          _
        // Predicated region
        $region41: #{moe_forward.1} parent=27 // pred_check
          %p308 = pneg %p134
        $region42: #{moe_forward.1} parent=27 // pred_check_branch
          %310 = sbr.rel (%p308) target = $region44
        $region43: #{moe_forward.1} parent=27 // pred_region
          %p311 = scmp.lt.s32.totalorder %s32, 3
          %s312 = scalar_select %p311, %s32, 3
          %s313 = smul.addr %s312, 4
          %s314 = smul.addr %s313, 4
          %s315 = scalar_lea.vmem %s4, %s314
        $region44: #{moe_forward.1} parent=27 // pred_fallthru
          _
        // Predicated region
        $region45: #{moe_forward.1} parent=27 // pred_check
          %p316 = pneg %p225
        $region46: #{moe_forward.1} parent=27 // pred_check_branch
          %318 = sbr.rel (%p316) target = $region48
        $region47: #{moe_forward.1} parent=27 // pred_region
          %p319 = scmp.lt.s32.totalorder %s32, 3
          %s320 = scalar_select %p319, %s32, 3
          %p321 = scmp.lt.s32.totalorder %s31, 1
          %s322 = scalar_select %p321, %s31, 1
          %s323 = smul.addr %s320, 2
          %s324 = sadd.s32 %s322, %s323
          %s325 = smul.addr %s324, 8
          %s326 = scalar_lea.vmem %s8, %s325
        $region48: #{moe_forward.1} parent=27 // pred_fallthru
          _
      $region28: #{moe_forward.1} parent=5 // pred_fallthru
        _
      %p327 = scmp.le.s32.totalorder 1, %s24
      %p328 = scmp.lt.s32.totalorder %s24, 9
      %p329 = pnand %p327, %p328
      %p330 = pneg %p329
      // Predicated region
      $region49: #{moe_forward.1} parent=5 // pred_check
        _
      $region50: #{moe_forward.1} parent=5 // pred_check_branch
        %332 = sbr.rel (%p329) target = $region52
      $region51: #{moe_forward.1} parent=5 // pred_region
        %s333 = ssub.s32 %s24, 1
        %p334 = scmp.lt.s32.totalorder %s33, 1
        %s335 = scalar_select %p334, %s33, 1
        %s336 = smul.addr %s335, 4
        %s337 = scalar_lea.vmem %s1, %s336
        %p338 = pneg %p62
        %p339 = pneg %p59
        %p340 = scmp.lt.s32.totalorder %s34, 3
        %s341 = scalar_select %p340, %s34, 3
        %s342 = smul.addr %s341, 4
        %s343 = smul.addr %s342, 4
        %s344 = scalar_lea.vmem %s2, %s343
        %p345 = pneg %p88
        %p346 = pneg %p85
        %p347 = scmp.lt.s32.totalorder %s34, 3
        %s348 = scalar_select %p347, %s34, 3
        %s349 = smul.addr %s348, 4
        %s350 = smul.addr %s349, 4
        %s351 = scalar_lea.vmem %s3, %s350
        %p352 = pneg %p114
        %p353 = pneg %p111
        %p354 = scmp.lt.s32.totalorder %s34, 3
        %s355 = scalar_select %p354, %s34, 3
        %s356 = smul.addr %s355, 4
        %s357 = smul.addr %s356, 4
        %s358 = scalar_lea.vmem %s4, %s357
        %p359 = pneg %p140
        %p360 = pneg %p137
        %p361 = pneg %p161
        %p362 = pneg %p158
        %p363 = pneg %p182
        %p364 = pneg %p179
        %p365 = pneg %p203
        %p366 = pneg %p200
        %p367 = scmp.lt.s32.totalorder %s34, 3
        %s368 = scalar_select %p367, %s34, 3
        %p369 = scmp.lt.s32.totalorder %s33, 1
        %s370 = scalar_select %p369, %s33, 1
        %s371 = smul.addr %s368, 2
        %s372 = sadd.s32 %s370, %s371
        %s373 = smul.addr %s372, 8
        %s374 = scalar_lea.vmem %s8, %s373
        %p375 = pneg %p231
        %p376 = pneg %p228
        %p377 = pneg %p257
        %p378 = pneg %p254
        %s379 = sand.u32 %s244, 1
        %s380 = scalar_lea.sflag [#allocation5], %s379
        %s381 = sand.u32 %s244, 1
        %s382 = smul.addr %s381, 8
        %s383 = scalar_lea.vmem [#allocation4], %s382
        %p384 = scmp.lt.s32.totalorder %s33, 1
        %s385 = scalar_select %p384, %s33, 1
        %s386 = smul.addr %s385, 4
        %s387 = scalar_lea.vmem %s1, %s386
        %p388 = scmp.lt.s32.totalorder %s34, 3
        %s389 = scalar_select %p388, %s34, 3
        %s390 = smul.addr %s389, 4
        %s391 = smul.addr %s390, 4
        %s392 = scalar_lea.vmem %s2, %s391
        %p393 = scmp.lt.s32.totalorder %s34, 3
        %s394 = scalar_select %p393, %s34, 3
        %s395 = smul.addr %s394, 4
        %s396 = smul.addr %s395, 4
        %s397 = scalar_lea.vmem %s3, %s396
        %p398 = scmp.lt.s32.totalorder %s34, 3
        %s399 = scalar_select %p398, %s34, 3
        %s400 = smul.addr %s399, 4
        %s401 = smul.addr %s400, 4
        %s402 = scalar_lea.vmem %s4, %s401
        %p403 = scmp.lt.s32.totalorder %s34, 3
        %s404 = scalar_select %p403, %s34, 3
        %p405 = scmp.lt.s32.totalorder %s33, 1
        %s406 = scalar_select %p405, %s33, 1
        %s407 = smul.addr %s404, 2
        %s408 = sadd.s32 %s406, %s407
        %s409 = smul.addr %s408, 8
        %s410 = scalar_lea.vmem %s8, %s409
        %p412 = scmp.eq.s32.totalorder %s34, 0
        // Predicated region
        $region53: #{moe_forward.1} parent=51 // pred_check
          %p413 = pneg %p412
        $region54: #{moe_forward.1} parent=51 // pred_check_branch
          %415 = sbr.rel (%p413) target = $region56
        $region55: #{moe_forward.1} parent=51 // pred_region
          %v416 = vld [vmem:[%s387] sm:$0xf]
          %v417 = vld [vmem:[%s5] sm:$0xf]
          %v418 = vld [vmem:[%s5 + $0x4] sm:$0xf]
          %v419 = vld [vmem:[%s5 + $0x8] sm:$0xf]
          %v420 = vld [vmem:[%s5 + $0xc] sm:$0xf]
          %v425 = vunpack.c.l.b16 %v417
          %v426 = vunpack.c.l.b16 %v418
          %v427 = vunpack.c.l.b16 %v419
          %v428 = vunpack.c.l.b16 %v420
          %v429 = vpack.c.b16 %v426, %v425
          %v430 = vpack.c.b16 %v428, %v427
          %vm433 = vcmask 261120
          %v435 = vsel %vm433, %v416, 0
          %437 = vmatprep.subr.bf16.mxu0 0
          %438 = vmatpush1.bf16.msra.mxu0 %v429
          %439 = vmatprep.subr.bf16.mxu0 0
          %440 = vmatpush1.bf16.msra.mxu0 %v430
          %441 = vmatprep.subr.bf16.mxu0 0
          %442 = vmatpush1.bf16.msra.mxu0 0
          %443 = vmatprep.subr.bf16.mxu0 0
          %444 = vmatpush1.bf16.msra.mxu0 0
          %445 = vmatprep.subr.bf16.mxu0 0
          %446 = vmatpush1.bf16.msra.mxu0 0
          %447 = vmatprep.subr.bf16.mxu0 0
          %448 = vmatpush1.bf16.msra.mxu0 0
          %449 = vmatprep.subr.bf16.mxu0 0
          %450 = vmatpush1.bf16.msra.mxu0 0
          %451 = vmatprep.subr.bf16.mxu0 0
          %452 = vmatpush1.bf16.msra.mxu0 0
          %453 = vmatprep.subr.bf16.mxu0 0
          %454 = vmatpush1.bf16.msra.mxu0 0
          %455 = vmatprep.subr.bf16.mxu0 0
          %456 = vmatpush1.bf16.msra.mxu0 0
          %457 = vmatprep.subr.bf16.mxu0 0
          %458 = vmatpush1.bf16.msra.mxu0 0
          %459 = vmatprep.subr.bf16.mxu0 0
          %460 = vmatpush1.bf16.msra.mxu0 0
          %461 = vmatprep.subr.bf16.mxu0 0
          %462 = vmatpush1.bf16.msra.mxu0 0
          %463 = vmatprep.subr.bf16.mxu0 0
          %464 = vmatpush1.bf16.msra.mxu0 0
          %465 = vmatprep.subr.bf16.mxu0 0
          %466 = vmatpush1.bf16.msra.mxu0 0
          %467 = vmatprep.subr.bf16.mxu0 0
          %468 = vmatpush1.bf16.msra.mxu0 0
          %469 = vmatprep.mubr.bf16.mxu0 0
          %470 = vmatmul.mubr.bf16.gmra.mrb[0].mxu0 %v435
          %v471 = vpop.f32.mrb[0].mxu0
          %v472 = vadd.f32 0.0, %v471
          %v473 = vpop.f32.mrb[0].mxu0
          %v474 = vpop.f32.mrb[0].mxu0
          %v475 = vpop.f32.mrb[0].mxu0
          %476 = vdwg.mxu0
          %v477 = vld [vmem:[%s6] sm:$0xf]
          %v478 = vld [vmem:[%s6 + $0x4] sm:$0xf]
          %v479 = vld [vmem:[%s6 + $0x8] sm:$0xf]
          %v480 = vld [vmem:[%s6 + $0xc] sm:$0xf]
          %v485 = vunpack.c.l.b16 %v477
          %v486 = vunpack.c.l.b16 %v478
          %v487 = vunpack.c.l.b16 %v479
          %v488 = vunpack.c.l.b16 %v480
          %v489 = vpack.c.b16 %v486, %v485
          %v490 = vpack.c.b16 %v488, %v487
          %493 = vmatprep.subr.bf16.mxu0 0
          %494 = vmatpush1.bf16.msra.mxu0 %v489
          %495 = vmatprep.subr.bf16.mxu0 0
          %496 = vmatpush1.bf16.msra.mxu0 %v490
          %497 = vmatprep.subr.bf16.mxu0 0
          %498 = vmatpush1.bf16.msra.mxu0 0
          %499 = vmatprep.subr.bf16.mxu0 0
          %500 = vmatpush1.bf16.msra.mxu0 0
          %501 = vmatprep.subr.bf16.mxu0 0
          %502 = vmatpush1.bf16.msra.mxu0 0
          %503 = vmatprep.subr.bf16.mxu0 0
          %504 = vmatpush1.bf16.msra.mxu0 0
          %505 = vmatprep.subr.bf16.mxu0 0
          %506 = vmatpush1.bf16.msra.mxu0 0
          %507 = vmatprep.subr.bf16.mxu0 0
          %508 = vmatpush1.bf16.msra.mxu0 0
          %509 = vmatprep.subr.bf16.mxu0 0
          %510 = vmatpush1.bf16.msra.mxu0 0
          %511 = vmatprep.subr.bf16.mxu0 0
          %512 = vmatpush1.bf16.msra.mxu0 0
          %513 = vmatprep.subr.bf16.mxu0 0
          %514 = vmatpush1.bf16.msra.mxu0 0
          %515 = vmatprep.subr.bf16.mxu0 0
          %516 = vmatpush1.bf16.msra.mxu0 0
          %517 = vmatprep.subr.bf16.mxu0 0
          %518 = vmatpush1.bf16.msra.mxu0 0
          %519 = vmatprep.subr.bf16.mxu0 0
          %520 = vmatpush1.bf16.msra.mxu0 0
          %521 = vmatprep.subr.bf16.mxu0 0
          %522 = vmatpush1.bf16.msra.mxu0 0
          %523 = vmatprep.subr.bf16.mxu0 0
          %524 = vmatpush1.bf16.msra.mxu0 0
          %525 = vmatprep.mubr.bf16.mxu0 0
          %526 = vmatmul.mubr.bf16.gmra.mrb[0].mxu0 %v435
          %v527 = vpop.f32.mrb[0].mxu0
          %v528 = vadd.f32 0.0, %v527
          %v529 = vpop.f32.mrb[0].mxu0
          %v530 = vpop.f32.mrb[0].mxu0
          %v531 = vpop.f32.mrb[0].mxu0
          %532 = vdwg.mxu0
          %v533 = vxor.u32 %v472, 2147483648
          %v534 = vmul.f32 %v533, 1.442695
          %v535 = vpow.pop %v534
          %v536 = vadd.f32 %v535, 1.0
          %v537 = vrcp.pop %v536
          %v538 = vmul.f32 1.0, %v537
          %v539 = vmul.f32 %v472, %v538
          %v540 = vmul.f32 %v539, %v528
          %v541 = vpack.c.bf16 %v540, %v540
          %v542 = vld [vmem:[%s7] sm:$0xf]
          %v543 = vld [vmem:[%s7 + $0x4] sm:$0xf]
          %v544 = vld [vmem:[%s7 + $0x8] sm:$0xf]
          %v545 = vld [vmem:[%s7 + $0xc] sm:$0xf]
          %v546 = vld [vmem:[%s7 + $0x10] sm:$0xf]
          %v547 = vld [vmem:[%s7 + $0x14] sm:$0xf]
          %v548 = vld [vmem:[%s7 + $0x18] sm:$0xf]
          %v549 = vld [vmem:[%s7 + $0x1c] sm:$0xf]
          %v558 = vunpack.c.l.b16 %v542
          %v559 = vunpack.c.l.b16 %v543
          %v560 = vunpack.c.l.b16 %v544
          %v561 = vunpack.c.l.b16 %v545
          %v562 = vunpack.c.l.b16 %v546
          %v563 = vunpack.c.l.b16 %v547
          %v564 = vunpack.c.l.b16 %v548
          %v565 = vunpack.c.l.b16 %v549
          %v566 = vpack.c.b16 %v559, %v558
          %v567 = vpack.c.b16 %v561, %v560
          %v568 = vpack.c.b16 %v563, %v562
          %v569 = vpack.c.b16 %v565, %v564
          %vm574 = vcmask 523264
          %v576 = vsel %vm574, %v541, 0
          %578 = vmatprep.subr.bf16.mxu0 0
          %579 = vmatpush1.bf16.msra.mxu0 %v566
          %580 = vmatprep.subr.bf16.mxu0 0
          %581 = vmatpush1.bf16.msra.mxu0 %v567
          %582 = vmatprep.subr.bf16.mxu0 0
          %583 = vmatpush1.bf16.msra.mxu0 %v568
          %584 = vmatprep.subr.bf16.mxu0 0
          %585 = vmatpush1.bf16.msra.mxu0 %v569
          %586 = vmatprep.subr.bf16.mxu0 0
          %587 = vmatpush1.bf16.msra.mxu0 0
          %588 = vmatprep.subr.bf16.mxu0 0
          %589 = vmatpush1.bf16.msra.mxu0 0
          %590 = vmatprep.subr.bf16.mxu0 0
          %591 = vmatpush1.bf16.msra.mxu0 0
          %592 = vmatprep.subr.bf16.mxu0 0
          %593 = vmatpush1.bf16.msra.mxu0 0
          %594 = vmatprep.subr.bf16.mxu0 0
          %595 = vmatpush1.bf16.msra.mxu0 0
          %596 = vmatprep.subr.bf16.mxu0 0
          %597 = vmatpush1.bf16.msra.mxu0 0
          %598 = vmatprep.subr.bf16.mxu0 0
          %599 = vmatpush1.bf16.msra.mxu0 0
          %600 = vmatprep.subr.bf16.mxu0 0
          %601 = vmatpush1.bf16.msra.mxu0 0
          %602 = vmatprep.subr.bf16.mxu0 0
          %603 = vmatpush1.bf16.msra.mxu0 0
          %604 = vmatprep.subr.bf16.mxu0 0
          %605 = vmatpush1.bf16.msra.mxu0 0
          %606 = vmatprep.subr.bf16.mxu0 0
          %607 = vmatpush1.bf16.msra.mxu0 0
          %608 = vmatprep.subr.bf16.mxu0 0
          %609 = vmatpush1.bf16.msra.mxu0 0
          %610 = vmatprep.mubr.bf16.mxu0 0
          %611 = vmatmul.mubr.bf16.gmra.mrb[0].mxu0 %v576
          %v612 = vpop.f32.mrb[0].mxu0
          %v613 = vadd.f32 0.0, %v612
          %v614 = vpop.f32.mrb[0].mxu0
          %v615 = vpop.f32.mrb[0].mxu0
          %v616 = vpop.f32.mrb[0].mxu0
          %617 = vdwg.mxu0
          %618 = vst.msk [vmem:[%s383] sm:$0xff] %vm433, %v613
        $region56: #{moe_forward.1} parent=51 // pred_fallthru
          _
        %s619 = sshra.s32 %s34, 7
        %s620 = sand.u32 %s34, 127
        %s621 = sadd.s32 %s619, %s33
        %s622 = smul.u32 %s621, 128
        %s623 = sshra.s32 %s34, 7
        %s624 = sand.u32 %s34, 127
        %s625 = sadd.s32 %s622, %s624
        %s626 = sld [smem:[#allocation3 + %s625]]
        %p627 = scmp.ne.s32.totalorder %s626, 0
        // Predicated region
        $region57: #{moe_forward.1} parent=51 // pred_check
          %p628 = pneg %p627
        $region58: #{moe_forward.1} parent=51 // pred_check_branch
          %630 = sbr.rel (%p628) target = $region60
        $region59: #{moe_forward.1} parent=51 // pred_region
          %v631 = vld [vmem:[%s387] sm:$0xf]
          %v632 = vld [vmem:[%s392] sm:$0xf]
          %v633 = vld [vmem:[%s392 + $0x4] sm:$0xf]
          %v634 = vld [vmem:[%s392 + $0x8] sm:$0xf]
          %v635 = vld [vmem:[%s392 + $0xc] sm:$0xf]
          %v640 = vunpack.c.l.b16 %v632
          %v641 = vunpack.c.l.b16 %v633
          %v642 = vunpack.c.l.b16 %v634
          %v643 = vunpack.c.l.b16 %v635
          %v644 = vpack.c.b16 %v641, %v640
          %v645 = vpack.c.b16 %v643, %v642
          %vm648 = vcmask 261120
          %v650 = vsel %vm648, %v631, 0
          %652 = vmatprep.subr.bf16.mxu0 0
          %653 = vmatpush1.bf16.msra.mxu0 %v644
          %654 = vmatprep.subr.bf16.mxu0 0
          %655 = vmatpush1.bf16.msra.mxu0 %v645
          %656 = vmatprep.subr.bf16.mxu0 0
          %657 = vmatpush1.bf16.msra.mxu0 0
          %658 = vmatprep.subr.bf16.mxu0 0
          %659 = vmatpush1.bf16.msra.mxu0 0
          %660 = vmatprep.subr.bf16.mxu0 0
          %661 = vmatpush1.bf16.msra.mxu0 0
          %662 = vmatprep.subr.bf16.mxu0 0
          %663 = vmatpush1.bf16.msra.mxu0 0
          %664 = vmatprep.subr.bf16.mxu0 0
          %665 = vmatpush1.bf16.msra.mxu0 0
          %666 = vmatprep.subr.bf16.mxu0 0
          %667 = vmatpush1.bf16.msra.mxu0 0
          %668 = vmatprep.subr.bf16.mxu0 0
          %669 = vmatpush1.bf16.msra.mxu0 0
          %670 = vmatprep.subr.bf16.mxu0 0
          %671 = vmatpush1.bf16.msra.mxu0 0
          %672 = vmatprep.subr.bf16.mxu0 0
          %673 = vmatpush1.bf16.msra.mxu0 0
          %674 = vmatprep.subr.bf16.mxu0 0
          %675 = vmatpush1.bf16.msra.mxu0 0
          %676 = vmatprep.subr.bf16.mxu0 0
          %677 = vmatpush1.bf16.msra.mxu0 0
          %678 = vmatprep.subr.bf16.mxu0 0
          %679 = vmatpush1.bf16.msra.mxu0 0
          %680 = vmatprep.subr.bf16.mxu0 0
          %681 = vmatpush1.bf16.msra.mxu0 0
          %682 = vmatprep.subr.bf16.mxu0 0
          %683 = vmatpush1.bf16.msra.mxu0 0
          %684 = vmatprep.mubr.bf16.mxu0 0
          %685 = vmatmul.mubr.bf16.gmra.mrb[0].mxu0 %v650
          %v686 = vpop.f32.mrb[0].mxu0
          %v687 = vadd.f32 0.0, %v686
          %v688 = vpop.f32.mrb[0].mxu0
          %v689 = vpop.f32.mrb[0].mxu0
          %v690 = vpop.f32.mrb[0].mxu0
          %691 = vdwg.mxu0
          %v692 = vld [vmem:[%s397] sm:$0xf]
          %v693 = vld [vmem:[%s397 + $0x4] sm:$0xf]
          %v694 = vld [vmem:[%s397 + $0x8] sm:$0xf]
          %v695 = vld [vmem:[%s397 + $0xc] sm:$0xf]
          %v700 = vunpack.c.l.b16 %v692
          %v701 = vunpack.c.l.b16 %v693
          %v702 = vunpack.c.l.b16 %v694
          %v703 = vunpack.c.l.b16 %v695
          %v704 = vpack.c.b16 %v701, %v700
          %v705 = vpack.c.b16 %v703, %v702
          %708 = vmatprep.subr.bf16.mxu0 0
          %709 = vmatpush1.bf16.msra.mxu0 %v704
          %710 = vmatprep.subr.bf16.mxu0 0
          %711 = vmatpush1.bf16.msra.mxu0 %v705
          %712 = vmatprep.subr.bf16.mxu0 0
          %713 = vmatpush1.bf16.msra.mxu0 0
          %714 = vmatprep.subr.bf16.mxu0 0
          %715 = vmatpush1.bf16.msra.mxu0 0
          %716 = vmatprep.subr.bf16.mxu0 0
          %717 = vmatpush1.bf16.msra.mxu0 0
          %718 = vmatprep.subr.bf16.mxu0 0
          %719 = vmatpush1.bf16.msra.mxu0 0
          %720 = vmatprep.subr.bf16.mxu0 0
          %721 = vmatpush1.bf16.msra.mxu0 0
          %722 = vmatprep.subr.bf16.mxu0 0
          %723 = vmatpush1.bf16.msra.mxu0 0
          %724 = vmatprep.subr.bf16.mxu0 0
          %725 = vmatpush1.bf16.msra.mxu0 0
          %726 = vmatprep.subr.bf16.mxu0 0
          %727 = vmatpush1.bf16.msra.mxu0 0
          %728 = vmatprep.subr.bf16.mxu0 0
          %729 = vmatpush1.bf16.msra.mxu0 0
          %730 = vmatprep.subr.bf16.mxu0 0
          %731 = vmatpush1.bf16.msra.mxu0 0
          %732 = vmatprep.subr.bf16.mxu0 0
          %733 = vmatpush1.bf16.msra.mxu0 0
          %734 = vmatprep.subr.bf16.mxu0 0
          %735 = vmatpush1.bf16.msra.mxu0 0
          %736 = vmatprep.subr.bf16.mxu0 0
          %737 = vmatpush1.bf16.msra.mxu0 0
          %738 = vmatprep.subr.bf16.mxu0 0
          %739 = vmatpush1.bf16.msra.mxu0 0
          %740 = vmatprep.mubr.bf16.mxu0 0
          %741 = vmatmul.mubr.bf16.gmra.mrb[0].mxu0 %v650
          %v742 = vpop.f32.mrb[0].mxu0
          %v743 = vadd.f32 0.0, %v742
          %v744 = vpop.f32.mrb[0].mxu0
          %v745 = vpop.f32.mrb[0].mxu0
          %v746 = vpop.f32.mrb[0].mxu0
          %747 = vdwg.mxu0
          %v748 = vxor.u32 %v687, 2147483648
          %v749 = vmul.f32 %v748, 1.442695
          %v750 = vpow.pop %v749
          %v751 = vadd.f32 %v750, 1.0
          %v752 = vrcp.pop %v751
          %v753 = vmul.f32 1.0, %v752
          %v754 = vmul.f32 %v687, %v753
          %v755 = vmul.f32 %v754, %v743
          %v756 = vld [vmem:[%s410] sm:$0xff]
          %758 = vset.pattern.permute.xlu0 0
          %759 = vperm.xlu0 %758, %v756
          %v760 = vpop.permute.xlu0 %759
          %v762 = vmul.f32 %v760, %v755
          %v763 = vpack.c.bf16 %v762, %v762
          %v764 = vld [vmem:[%s383] sm:$0xff]
          %v765 = vld [vmem:[%s402] sm:$0xf]
          %v766 = vld [vmem:[%s402 + $0x4] sm:$0xf]
          %v767 = vld [vmem:[%s402 + $0x8] sm:$0xf]
          %v768 = vld [vmem:[%s402 + $0xc] sm:$0xf]
          %v773 = vunpack.c.l.b16 %v765
          %v774 = vunpack.c.l.b16 %v766
          %v775 = vunpack.c.l.b16 %v767
          %v776 = vunpack.c.l.b16 %v768
          %v777 = vpack.c.b16 %v774, %v773
          %v778 = vpack.c.b16 %v776, %v775
          %v782 = vsel %vm648, %v763, 0
          %784 = vmatprep.subr.bf16.mxu0 0
          %785 = vmatpush1.bf16.msra.mxu0 %v777
          %786 = vmatprep.subr.bf16.mxu0 0
          %787 = vmatpush1.bf16.msra.mxu0 %v778
          %788 = vmatprep.subr.bf16.mxu0 0
          %789 = vmatpush1.bf16.msra.mxu0 0
          %790 = vmatprep.subr.bf16.mxu0 0
          %791 = vmatpush1.bf16.msra.mxu0 0
          %792 = vmatprep.subr.bf16.mxu0 0
          %793 = vmatpush1.bf16.msra.mxu0 0
          %794 = vmatprep.subr.bf16.mxu0 0
          %795 = vmatpush1.bf16.msra.mxu0 0
          %796 = vmatprep.subr.bf16.mxu0 0
          %797 = vmatpush1.bf16.msra.mxu0 0
          %798 = vmatprep.subr.bf16.mxu0 0
          %799 = vmatpush1.bf16.msra.mxu0 0
          %800 = vmatprep.subr.bf16.mxu0 0
          %801 = vmatpush1.bf16.msra.mxu0 0
          %802 = vmatprep.subr.bf16.mxu0 0
          %803 = vmatpush1.bf16.msra.mxu0 0
          %804 = vmatprep.subr.bf16.mxu0 0
          %805 = vmatpush1.bf16.msra.mxu0 0
          %806 = vmatprep.subr.bf16.mxu0 0
          %807 = vmatpush1.bf16.msra.mxu0 0
          %808 = vmatprep.subr.bf16.mxu0 0
          %809 = vmatpush1.bf16.msra.mxu0 0
          %810 = vmatprep.subr.bf16.mxu0 0
          %811 = vmatpush1.bf16.msra.mxu0 0
          %812 = vmatprep.subr.bf16.mxu0 0
          %813 = vmatpush1.bf16.msra.mxu0 0
          %814 = vmatprep.subr.bf16.mxu0 0
          %815 = vmatpush1.bf16.msra.mxu0 0
          %816 = vmatprep.mubr.bf16.mxu0 0
          %817 = vmatmul.mubr.bf16.gmra.mrb[0].mxu0 %v782
          %v818 = vpop.f32.mrb[0].mxu0
          %v819 = vadd.f32 0.0, %v818
          %v820 = vpop.f32.mrb[0].mxu0
          %v821 = vpop.f32.mrb[0].mxu0
          %v822 = vpop.f32.mrb[0].mxu0
          %823 = vdwg.mxu0
          %v824 = vadd.f32 %v764, %v819
          %825 = vst.msk [vmem:[%s383] sm:$0xff] %vm648, %v824
        $region60: #{moe_forward.1} parent=51 // pred_fallthru
          _
        %s826 = sand.u32 %s244, 1
        %s827 = scalar_lea.sflag [#allocation5], %s826
        %s828 = sand.u32 %s244, 1
        %s829 = smul.addr %s828, 8
        %s830 = scalar_lea.vmem [#allocation4], %s829
        // Predicated region
        $region61: #{moe_forward.1} parent=51 // pred_check
          %p831 = pneg %p254
        $region62: #{moe_forward.1} parent=51 // pred_check_branch
          %833 = sbr.rel (%p831) target = $region64
        $region63: #{moe_forward.1} parent=51 // pred_region
          %s835 = ssub.s32 128, 128
          %836 = vsyncadd %s827, %s835
          %s837 = smul.addr %s33, 128
          %s838 = scalar_lea.hbm %s9, %s837
          %s840 = sshll.u32 %s830, 4
          %s841 = int_to_ptr.vmem [resolvable:$true] %s840
          %843 = dma.vmem_to_hbm [thread:$0]  %s841, 128, %s838, %s827
        $region64: #{moe_forward.1} parent=51 // pred_fallthru
          _
      $region52: #{moe_forward.1} parent=5 // pred_fallthru
        _
      %p844 = scmp.le.s32.totalorder 2, %s24
      // Predicated region
      $region65: #{moe_forward.1} parent=5 // pred_check
        %p845 = pneg %p844
      $region66: #{moe_forward.1} parent=5 // pred_check_branch
        %847 = sbr.rel (%p845) target = $region68
      $region67: #{moe_forward.1} parent=5 // pred_region
        %s848 = ssub.s32 %s24, 2
        // Predicated region
        $region69: #{moe_forward.1} parent=67 // pred_check
          %p849 = pneg %p260
        $region70: #{moe_forward.1} parent=67 // pred_check_branch
          %851 = sbr.rel (%p849) target = $region72
        $region71: #{moe_forward.1} parent=67 // pred_region
          %s852 = sand.u32 %s245, 1
          %s853 = scalar_lea.sflag [#allocation5], %s852
          %s854 = sand.u32 %s245, 1
          %s855 = smul.addr %s854, 8
          %s856 = scalar_lea.vmem [#allocation4], %s855
          %857 = dma.done %s853, 128
        $region72: #{moe_forward.1} parent=67 // pred_fallthru
          _
      $region68: #{moe_forward.1} parent=5 // pred_fallthru
        _
    $region6: #{moe_forward.1} parent=1 // loop_footer
      %s28 = sadd.s32 1, %s24
    $region7: #{moe_forward.1} parent=1 // loop_footer_branch
      %23 = sbr.rel target = $region3
    $region8: #{moe_forward.1} parent=1 // loop_exit
      _
    %858 = vsyncpa [#allocation5], 1
    %s859 = scalar_lea.sflag [#allocation5], 1
    %860 = vsyncpa %s859, 1

</llo_original>
